<compile_context>
chip_gen: v7x
topology: tpu7x:2x2x1
jax: 0.10.0
libtpu: 0.0.40
codegen_flags: <defaults>
</compile_context>

<pallas_src>
import jax
import jax.numpy as jnp
from jax.experimental import pallas as pl
from jax.experimental.pallas import tpu as pltpu

BN_EPS = 1e-5
LRELU_SLOPE = 0.2
BATCH_TILE = 256  # rows per grid step (multiple of 8); fits easily in VMEM on v5e/v6e/v7x


def _leaky_relu(h):
    return jnp.where(h >= 0, h, LRELU_SLOPE * h)


def generator_kernel(
    lab_ref, noi_ref,
    w1a_ref, w1b_ref, b1_ref,
    w2_ref, b2_ref,
    w3_ref, b3_ref,
    w4_ref, b4_ref,
    out_ref,
):
    # Block 1: (BN-folded) Linear(54, 288) + LeakyReLU(0.2). The 54-dim input
    # arrives as two operands (labels: 4 cols, noise: 50 cols) matching
    # torch.cat((labels, noise), -1) @ W1 == labels @ W1[:4] + noise @ W1[4:].
    h = (
        jnp.dot(lab_ref[...], w1a_ref[...], preferred_element_type=jnp.float32)
        + jnp.dot(noi_ref[...], w1b_ref[...], preferred_element_type=jnp.float32)
        + b1_ref[...]
    )
    h = _leaky_relu(h).astype(jnp.bfloat16)

    # Block 2: (BN-folded) Linear(288, 256) + LeakyReLU(0.2)
    h = jnp.dot(h, w2_ref[...], preferred_element_type=jnp.float32) + b2_ref[...]
    h = _leaky_relu(h).astype(jnp.bfloat16)

    # Block 3: (BN-folded) Linear(256, 64) + LeakyReLU(0.2)
    h = jnp.dot(h, w3_ref[...], preferred_element_type=jnp.float32) + b3_ref[...]
    h = _leaky_relu(h).astype(jnp.bfloat16)

    # Head: Linear(64, 4), f32 output.
    # Note: (TB, 4) output is lane-sparse; output volume is tiny so the masked
    # stores are negligible here.
    out_ref[...] = (
        jnp.dot(h, w4_ref[...], preferred_element_type=jnp.float32) + b4_ref[...]
    )


def _fold_bn(w, b, gamma, beta, mean, var):
    """Fold eval-mode BatchNorm1d into the preceding Linear."""
    inv_std = jax.lax.rsqrt(var + BN_EPS)
    scale = gamma * inv_std                      # (1, fout)
    return w * scale, (b - mean) * scale + beta  # (in, fout), (1, fout)


def _round_up(x, m):
    return (x + m - 1) // m * m


@jax.jit
def generator_forward(noise, labels, params):
    """noise: (B, 50), labels: (B, 4) -> img: (B, 4) float32."""
    B = noise.shape[0]

    # --- Trace-time BN folding + bf16 weight prep (cheap, tiny matrices) ---
    w1, b1 = _fold_bn(params["w1"], params["b1"], params["g1"], params["be1"],
                      params["m1"], params["v1"])
    w2, b2 = _fold_bn(params["w2"], params["b2"], params["g2"], params["be2"],
                      params["m2"], params["v2"])
    w3, b3 = _fold_bn(params["w3"], params["b3"], params["g3"], params["be3"],
                      params["m3"], params["v3"])
    w4, b4 = params["w4"], params["b4"]

    w1a = w1[:4].astype(jnp.bfloat16)   # rows matching the `labels` columns
    w1b = w1[4:].astype(jnp.bfloat16)   # rows matching the `noise` columns
    w2 = w2.astype(jnp.bfloat16)
    w3 = w3.astype(jnp.bfloat16)
    w4 = w4.astype(jnp.bfloat16)
    b1 = b1.astype(jnp.float32)
    b2 = b2.astype(jnp.float32)
    b3 = b3.astype(jnp.float32)
    b4 = b4.astype(jnp.float32)

    # --- Batch tiling: pad B so every tile is full and a multiple of 8 ---
    if B <= BATCH_TILE:
        tb = max(8, _round_up(B, 8))
        pB = tb
    else:
        tb = BATCH_TILE
        pB = _round_up(B, BATCH_TILE)

    lab = jnp.pad(labels, ((0, pB - B), (0, 0))).astype(jnp.bfloat16)
    noi = jnp.pad(noise, ((0, pB - B), (0, 0))).astype(jnp.bfloat16)

    def row_spec(cols):
        return pl.BlockSpec((tb, cols), lambda i: (i, 0))

    def resident(arr):  # full-array block, constant index -> stays in VMEM
        return pl.BlockSpec(arr.shape, lambda i: (0, 0))

    out = pl.pallas_call(
        generator_kernel,
        out_shape=jax.ShapeDtypeStruct((pB, 4), jnp.float32),
        grid=(pB // tb,),
        in_specs=[
            row_spec(4), row_spec(50),
            resident(w1a), resident(w1b), resident(b1),
            resident(w2), resident(b2),
            resident(w3), resident(b3),
            resident(w4), resident(b4),
        ],
        out_specs=pl.BlockSpec((tb, 4), lambda i: (i, 0)),
        compiler_params=pltpu.CompilerParams(
            dimension_semantics=("parallel",)),
    )(lab, noi, w1a, w1b, b1, w2, b2, w3, b3, w4, b4)

    return out[:B]


def init_params(key):
    """Deterministic synthetic parameters with the module's shapes."""
    dims = [(54, 288), (288, 256), (256, 64), (64, 4)]
    params = {}
    for idx, (fin, fout) in enumerate(dims, start=1):
        key, kw, kb = jax.random.split(key, 3)
        bound = 1.0 / jnp.sqrt(fin)
        # Stored as (in, out): transpose of PyTorch's (out, in) weight.
        params[f"w{idx}"] = jax.random.uniform(
            kw, (fin, fout), jnp.float32, -bound, bound)
        params[f"b{idx}"] = jax.random.uniform(
            kb, (1, fout), jnp.float32, -bound, bound)
        if idx <= 3:  # the first three blocks have BatchNorm1d
            key, kg, kbe, km, kv = jax.random.split(key, 5)
            params[f"g{idx}"] = 1.0 + 0.1 * jax.random.normal(kg, (1, fout), jnp.float32)
            params[f"be{idx}"] = 0.1 * jax.random.normal(kbe, (1, fout), jnp.float32)
            params[f"m{idx}"] = 0.1 * jax.random.normal(km, (1, fout), jnp.float32)
            params[f"v{idx}"] = 1.0 + 0.1 * jax.random.uniform(kv, (1, fout), jnp.float32)
    return params


def reference_forward(noise, labels, params):
    """Pure-JAX f32 reference with explicit eval-mode BatchNorm (module semantics)."""
    h = jnp.concatenate([labels, noise], axis=-1)
    for idx in (1, 2, 3):
        h = h @ params[f"w{idx}"] + params[f"b{idx}"]
        inv_std = jax.lax.rsqrt(params[f"v{idx}"] + BN_EPS)
        h = (h - params[f"m{idx}"]) * inv_std * params[f"g{idx}"] + params[f"be{idx}"]
        h = _leaky_relu(h)
    return h @ params["w4"] + params["b4"]


if __name__ == "__main__":
    key = jax.random.PRNGKey(0)
    key, k_params = jax.random.split(key)
    params = init_params(k_params)

    # B=8 exercises the single-tile path; B=600 exercises grid > 1 + padding.
    for B in (8, 600):
        kb = jax.random.fold_in(key, B)
        kn, kl = jax.random.split(kb)
        noise = jax.random.normal(kn, (B, 50), jnp.float32)
        labels = jax.random.normal(kl, (B, 4), jnp.float32)

        out = jax.block_until_ready(generator_forward(noise, labels, params))
        ref = reference_forward(noise, labels, params)

        assert out.shape == (B, 4)
        rel_err = jnp.linalg.norm(out - ref) / (jnp.linalg.norm(ref) + 1e-12)
        assert rel_err < 3e-2, f"relative error {rel_err} too large at B={B}"

    print("KERNEL_OK")
</pallas_src>

<mosaic_0001>
module attributes {stable_mosaic.version = 11 : i64} {
  func.func @generator_kernel(%arg0: i32, %arg1: memref<8x4xbf16, #tpu.memory_space<vmem>>, %arg2: memref<8x50xbf16, #tpu.memory_space<vmem>>, %arg3: memref<4x288xbf16, #tpu.memory_space<vmem>>, %arg4: memref<50x288xbf16, #tpu.memory_space<vmem>>, %arg5: memref<1x288xf32, #tpu.memory_space<vmem>>, %arg6: memref<288x256xbf16, #tpu.memory_space<vmem>>, %arg7: memref<1x256xf32, #tpu.memory_space<vmem>>, %arg8: memref<256x64xbf16, #tpu.memory_space<vmem>>, %arg9: memref<1x64xf32, #tpu.memory_space<vmem>>, %arg10: memref<64x4xbf16, #tpu.memory_space<vmem>>, %arg11: memref<1x4xf32, #tpu.memory_space<vmem>>, %arg12: memref<8x4xf32, #tpu.memory_space<vmem>>) attributes {dimension_semantics = [#tpu.dimension_semantics<parallel>], iteration_bounds = array<i64: 1>, scalar_prefetch = 0 : i64, scratch_operands = 0 : i64, tpu.core_type = #tpu.core_type<tc>, window_params = [{transform_indices = @transform_0, window_bounds = array<i64: 8, 4>}, {transform_indices = @transform_1, window_bounds = array<i64: 8, 50>}, {pipeline_mode = #tpu.pipeline_mode<synchronous>, transform_indices = @transform_2, window_bounds = array<i64: 4, 288>}, {pipeline_mode = #tpu.pipeline_mode<synchronous>, transform_indices = @transform_3, window_bounds = array<i64: 50, 288>}, {pipeline_mode = #tpu.pipeline_mode<synchronous>, transform_indices = @transform_4, window_bounds = array<i64: 1, 288>}, {pipeline_mode = #tpu.pipeline_mode<synchronous>, transform_indices = @transform_5, window_bounds = array<i64: 288, 256>}, {pipeline_mode = #tpu.pipeline_mode<synchronous>, transform_indices = @transform_6, window_bounds = array<i64: 1, 256>}, {pipeline_mode = #tpu.pipeline_mode<synchronous>, transform_indices = @transform_7, window_bounds = array<i64: 256, 64>}, {pipeline_mode = #tpu.pipeline_mode<synchronous>, transform_indices = @transform_8, window_bounds = array<i64: 1, 64>}, {pipeline_mode = #tpu.pipeline_mode<synchronous>, transform_indices = @transform_9, window_bounds = array<i64: 64, 4>}, {pipeline_mode = #tpu.pipeline_mode<synchronous>, transform_indices = @transform_10, window_bounds = array<i64: 1, 4>}, {transform_indices = @transform_11, window_bounds = array<i64: 8, 4>}]} {
    %c0 = arith.constant 0 : index
    %c0_0 = arith.constant 0 : index
    %0 = vector.load %arg1[%c0, %c0_0] : memref<8x4xbf16, #tpu.memory_space<vmem>>, vector<8x4xbf16>
    %c0_1 = arith.constant 0 : index
    %c0_2 = arith.constant 0 : index
    %1 = vector.load %arg3[%c0_1, %c0_2] : memref<4x288xbf16, #tpu.memory_space<vmem>>, vector<4x288xbf16>
    %cst = arith.constant dense<0.000000e+00> : vector<8x288xf32>
    %2 = tpu.matmul %0, %1, %cst {dimension_numbers = #tpu.dot_dimension_numbers<[1], [0], [0], [1], [0, 0, 1, 1], [], []>} : vector<8x4xbf16>, vector<4x288xbf16>, vector<8x288xf32> -> vector<8x288xf32>
    %c0_3 = arith.constant 0 : index
    %c0_4 = arith.constant 0 : index
    %3 = vector.load %arg2[%c0_3, %c0_4] : memref<8x50xbf16, #tpu.memory_space<vmem>>, vector<8x50xbf16>
    %c0_5 = arith.constant 0 : index
    %c0_6 = arith.constant 0 : index
    %4 = vector.load %arg4[%c0_5, %c0_6] : memref<50x288xbf16, #tpu.memory_space<vmem>>, vector<50x288xbf16>
    %cst_7 = arith.constant dense<0.000000e+00> : vector<8x288xf32>
    %5 = tpu.matmul %3, %4, %cst_7 {dimension_numbers = #tpu.dot_dimension_numbers<[1], [0], [0], [1], [0, 0, 1, 1], [], []>} : vector<8x50xbf16>, vector<50x288xbf16>, vector<8x288xf32> -> vector<8x288xf32>
    %6 = arith.addf %2, %5 : vector<8x288xf32>
    %c0_8 = arith.constant 0 : index
    %c0_9 = arith.constant 0 : index
    %7 = vector.load %arg5[%c0_8, %c0_9] : memref<1x288xf32, #tpu.memory_space<vmem>>, vector<1x288xf32>
    %8 = vector.broadcast %7 : vector<1x288xf32> to vector<8x288xf32>
    %9 = arith.addf %6, %8 : vector<8x288xf32>
    %cst_10 = arith.constant 0.000000e+00 : f32
    %10 = vector.broadcast %cst_10 : f32 to vector<8x288xf32>
    %11 = arith.cmpf oge, %9, %10 : vector<8x288xf32>
    %cst_11 = arith.constant 2.000000e-01 : f32
    %12 = vector.broadcast %cst_11 : f32 to vector<8x288xf32>
    %13 = arith.mulf %12, %9 : vector<8x288xf32>
    %14 = arith.select %11, %9, %13 : vector<8x288xi1>, vector<8x288xf32>
    %15 = arith.truncf %14 : vector<8x288xf32> to vector<8x288xbf16>
    %c0_12 = arith.constant 0 : index
    %c0_13 = arith.constant 0 : index
    %16 = vector.load %arg6[%c0_12, %c0_13] : memref<288x256xbf16, #tpu.memory_space<vmem>>, vector<288x256xbf16>
    %cst_14 = arith.constant dense<0.000000e+00> : vector<8x256xf32>
    %17 = tpu.matmul %15, %16, %cst_14 {dimension_numbers = #tpu.dot_dimension_numbers<[1], [0], [0], [1], [0, 0, 1, 1], [], []>} : vector<8x288xbf16>, vector<288x256xbf16>, vector<8x256xf32> -> vector<8x256xf32>
    %c0_15 = arith.constant 0 : index
    %c0_16 = arith.constant 0 : index
    %18 = vector.load %arg7[%c0_15, %c0_16] : memref<1x256xf32, #tpu.memory_space<vmem>>, vector<1x256xf32>
    %19 = vector.broadcast %18 : vector<1x256xf32> to vector<8x256xf32>
    %20 = arith.addf %17, %19 : vector<8x256xf32>
    %cst_17 = arith.constant 0.000000e+00 : f32
    %21 = vector.broadcast %cst_17 : f32 to vector<8x256xf32>
    %22 = arith.cmpf oge, %20, %21 : vector<8x256xf32>
    %cst_18 = arith.constant 2.000000e-01 : f32
    %23 = vector.broadcast %cst_18 : f32 to vector<8x256xf32>
    %24 = arith.mulf %23, %20 : vector<8x256xf32>
    %25 = arith.select %22, %20, %24 : vector<8x256xi1>, vector<8x256xf32>
    %26 = arith.truncf %25 : vector<8x256xf32> to vector<8x256xbf16>
    %c0_19 = arith.constant 0 : index
    %c0_20 = arith.constant 0 : index
    %27 = vector.load %arg8[%c0_19, %c0_20] : memref<256x64xbf16, #tpu.memory_space<vmem>>, vector<256x64xbf16>
    %cst_21 = arith.constant dense<0.000000e+00> : vector<8x64xf32>
    %28 = tpu.matmul %26, %27, %cst_21 {dimension_numbers = #tpu.dot_dimension_numbers<[1], [0], [0], [1], [0, 0, 1, 1], [], []>} : vector<8x256xbf16>, vector<256x64xbf16>, vector<8x64xf32> -> vector<8x64xf32>
    %c0_22 = arith.constant 0 : index
    %c0_23 = arith.constant 0 : index
    %29 = vector.load %arg9[%c0_22, %c0_23] : memref<1x64xf32, #tpu.memory_space<vmem>>, vector<1x64xf32>
    %30 = vector.broadcast %29 : vector<1x64xf32> to vector<8x64xf32>
    %31 = arith.addf %28, %30 : vector<8x64xf32>
    %cst_24 = arith.constant 0.000000e+00 : f32
    %32 = vector.broadcast %cst_24 : f32 to vector<8x64xf32>
    %33 = arith.cmpf oge, %31, %32 : vector<8x64xf32>
    %cst_25 = arith.constant 2.000000e-01 : f32
    %34 = vector.broadcast %cst_25 : f32 to vector<8x64xf32>
    %35 = arith.mulf %34, %31 : vector<8x64xf32>
    %36 = arith.select %33, %31, %35 : vector<8x64xi1>, vector<8x64xf32>
    %37 = arith.truncf %36 : vector<8x64xf32> to vector<8x64xbf16>
    %c0_26 = arith.constant 0 : index
    %c0_27 = arith.constant 0 : index
    %38 = vector.load %arg10[%c0_26, %c0_27] : memref<64x4xbf16, #tpu.memory_space<vmem>>, vector<64x4xbf16>
    %cst_28 = arith.constant dense<0.000000e+00> : vector<8x4xf32>
    %39 = tpu.matmul %37, %38, %cst_28 {dimension_numbers = #tpu.dot_dimension_numbers<[1], [0], [0], [1], [0, 0, 1, 1], [], []>} : vector<8x64xbf16>, vector<64x4xbf16>, vector<8x4xf32> -> vector<8x4xf32>
    %c0_29 = arith.constant 0 : index
    %c0_30 = arith.constant 0 : index
    %40 = vector.load %arg11[%c0_29, %c0_30] : memref<1x4xf32, #tpu.memory_space<vmem>>, vector<1x4xf32>
    %41 = vector.broadcast %40 : vector<1x4xf32> to vector<8x4xf32>
    %42 = arith.addf %39, %41 : vector<8x4xf32>
    %c0_31 = arith.constant 0 : index
    %c0_32 = arith.constant 0 : index
    %43 = vector.load %arg12[%c0_31, %c0_32] : memref<8x4xf32, #tpu.memory_space<vmem>>, vector<8x4xf32>
    tpu.vector_store %arg12[%c0_31, %c0_32], %42 {strides = array<i32>} : memref<8x4xf32, #tpu.memory_space<vmem>>, vector<8x4xf32>,
    return
  }
  func.func @transform_0(%arg0: i32) -> (i32, i32) {
    %c0_i32 = arith.constant 0 : i32
    %c0_i32_0 = arith.constant 0 : i32
    return %arg0, %c0_i32 : i32, i32
  }
  func.func @transform_1(%arg0: i32) -> (i32, i32) {
    %c0_i32 = arith.constant 0 : i32
    %c0_i32_0 = arith.constant 0 : i32
    return %arg0, %c0_i32 : i32, i32
  }
  func.func @transform_2(%arg0: i32) -> (i32, i32) {
    %c0_i32 = arith.constant 0 : i32
    %c0_i32_0 = arith.constant 0 : i32
    %c0_i32_1 = arith.constant 0 : i32
    return %c0_i32, %c0_i32_0 : i32, i32
  }
  func.func @transform_3(%arg0: i32) -> (i32, i32) {
    %c0_i32 = arith.constant 0 : i32
    %c0_i32_0 = arith.constant 0 : i32
    %c0_i32_1 = arith.constant 0 : i32
    return %c0_i32, %c0_i32_0 : i32, i32
  }
  func.func @transform_4(%arg0: i32) -> (i32, i32) {
    %c0_i32 = arith.constant 0 : i32
    %c0_i32_0 = arith.constant 0 : i32
    %c0_i32_1 = arith.constant 0 : i32
    return %c0_i32, %c0_i32_0 : i32, i32
  }
  func.func @transform_5(%arg0: i32) -> (i32, i32) {
    %c0_i32 = arith.constant 0 : i32
    %c0_i32_0 = arith.constant 0 : i32
    %c0_i32_1 = arith.constant 0 : i32
    return %c0_i32, %c0_i32_0 : i32, i32
  }
  func.func @transform_6(%arg0: i32) -> (i32, i32) {
    %c0_i32 = arith.constant 0 : i32
    %c0_i32_0 = arith.constant 0 : i32
    %c0_i32_1 = arith.constant 0 : i32
    return %c0_i32, %c0_i32_0 : i32, i32
  }
  func.func @transform_7(%arg0: i32) -> (i32, i32) {
    %c0_i32 = arith.constant 0 : i32
    %c0_i32_0 = arith.constant 0 : i32
    %c0_i32_1 = arith.constant 0 : i32
    return %c0_i32, %c0_i32_0 : i32, i32
  }
  func.func @transform_8(%arg0: i32) -> (i32, i32) {
    %c0_i32 = arith.constant 0 : i32
    %c0_i32_0 = arith.constant 0 : i32
    %c0_i32_1 = arith.constant 0 : i32
    return %c0_i32, %c0_i32_0 : i32, i32
  }
  func.func @transform_9(%arg0: i32) -> (i32, i32) {
    %c0_i32 = arith.constant 0 : i32
    %c0_i32_0 = arith.constant 0 : i32
    %c0_i32_1 = arith.constant 0 : i32
    return %c0_i32, %c0_i32_0 : i32, i32
  }
  func.func @transform_10(%arg0: i32) -> (i32, i32) {
    %c0_i32 = arith.constant 0 : i32
    %c0_i32_0 = arith.constant 0 : i32
    %c0_i32_1 = arith.constant 0 : i32
    return %c0_i32, %c0_i32_0 : i32, i32
  }
  func.func @transform_11(%arg0: i32) -> (i32, i32) {
    %c0_i32 = arith.constant 0 : i32
    %c0_i32_0 = arith.constant 0 : i32
    return %arg0, %c0_i32 : i32, i32
  }
}

</mosaic_0001>

<llo_original>
// kernel: generator_forward.1
$region0: #{generator_forward.1}
  #allocation0 [shape = 'u32[]', space=smem, size = 0x4, offset = 0x4, fixed_abs, tag = 'smem constant byte address 0x4 - core index']
  #allocation1 [shape = 'u32[144,128]{1,0:T(1,128)}', space=vmem, size = 0x12000, scoped, tag = 'internal scratch']
  %s0 = inlined_call_operand.vmem [shape: bf16[8,4], index: 0, kind: input, shape index: {}]
  %s1 = inlined_call_operand.vmem [shape: bf16[8,50], index: 1, kind: input, shape index: {}]
  %s2 = inlined_call_operand.vmem [shape: bf16[4,288], index: 2, kind: input, shape index: {}]
  %s3 = inlined_call_operand.vmem [shape: bf16[50,288], index: 3, kind: input, shape index: {}]
  %s4 = inlined_call_operand.vmem [shape: f32[1,288], index: 4, kind: input, shape index: {}]
  %s5 = inlined_call_operand.vmem [shape: bf16[288,256], index: 5, kind: input, shape index: {}]
  %s6 = inlined_call_operand.vmem [shape: f32[1,256], index: 6, kind: input, shape index: {}]
  %s7 = inlined_call_operand.vmem [shape: bf16[256,64], index: 7, kind: input, shape index: {}]
  %s8 = inlined_call_operand.vmem [shape: f32[1,64], index: 8, kind: input, shape index: {}]
  %s9 = inlined_call_operand.vmem [shape: bf16[64,4], index: 9, kind: input, shape index: {}]
  %s10 = inlined_call_operand.vmem [shape: f32[1,4], index: 10, kind: input, shape index: {}]
  %s11 = inlined_call_operand.vmem [shape: f32[8,4], index: 11, kind: output, shape index: {}]
  %s12 = sld [smem:[#allocation0]]
  $region54: #{generator_forward.1} parent=0
    _
  %s14 = ssub.s32 1, %s12
  %s15 = scalar_select 0, %s14, %s12
  // Predicated region
  $region2: #{generator_forward.1} parent=0 // pred_check
    _
  $region3: #{generator_forward.1} parent=0 // pred_check_branch
    %17 = sbr.rel (0) target = $region5
  $region4: #{generator_forward.1} parent=0 // pred_region
    _
  $region5: #{generator_forward.1} parent=0 // pred_fallthru
    _
  // Predicated region
  $region6: #{generator_forward.1} parent=0 // pred_check
    _
  $region7: #{generator_forward.1} parent=0 // pred_check_branch
    %19 = sbr.rel (0) target = $region9
  $region8: #{generator_forward.1} parent=0 // pred_region
    _
  $region9: #{generator_forward.1} parent=0 // pred_fallthru
    _
  // Predicated region
  $region10: #{generator_forward.1} parent=0 // pred_check
    _
  $region11: #{generator_forward.1} parent=0 // pred_check_branch
    %21 = sbr.rel (0) target = $region13
  $region12: #{generator_forward.1} parent=0 // pred_region
    _
  $region13: #{generator_forward.1} parent=0 // pred_fallthru
    _
  // Predicated region
  $region14: #{generator_forward.1} parent=0 // pred_check
    _
  $region15: #{generator_forward.1} parent=0 // pred_check_branch
    %23 = sbr.rel (0) target = $region17
  $region16: #{generator_forward.1} parent=0 // pred_region
    _
  $region17: #{generator_forward.1} parent=0 // pred_fallthru
    _
  // Predicated region
  $region18: #{generator_forward.1} parent=0 // pred_check
    _
  $region19: #{generator_forward.1} parent=0 // pred_check_branch
    %25 = sbr.rel (0) target = $region21
  $region20: #{generator_forward.1} parent=0 // pred_region
    _
  $region21: #{generator_forward.1} parent=0 // pred_fallthru
    _
  // Predicated region
  $region22: #{generator_forward.1} parent=0 // pred_check
    _
  $region23: #{generator_forward.1} parent=0 // pred_check_branch
    %27 = sbr.rel (0) target = $region25
  $region24: #{generator_forward.1} parent=0 // pred_region
    _
  $region25: #{generator_forward.1} parent=0 // pred_fallthru
    _
  // Predicated region
  $region26: #{generator_forward.1} parent=0 // pred_check
    _
  $region27: #{generator_forward.1} parent=0 // pred_check_branch
    %29 = sbr.rel (0) target = $region29
  $region28: #{generator_forward.1} parent=0 // pred_region
    _
  $region29: #{generator_forward.1} parent=0 // pred_fallthru
    _
  // Predicated region
  $region30: #{generator_forward.1} parent=0 // pred_check
    _
  $region31: #{generator_forward.1} parent=0 // pred_check_branch
    %31 = sbr.rel (0) target = $region33
  $region32: #{generator_forward.1} parent=0 // pred_region
    _
  $region33: #{generator_forward.1} parent=0 // pred_fallthru
    _
  // Predicated region
  $region34: #{generator_forward.1} parent=0 // pred_check
    _
  $region35: #{generator_forward.1} parent=0 // pred_check_branch
    %33 = sbr.rel (0) target = $region37
  $region36: #{generator_forward.1} parent=0 // pred_region
    _
  $region37: #{generator_forward.1} parent=0 // pred_fallthru
    _
  // Predicated region
  $region38: #{generator_forward.1} parent=0 // pred_check
    _
  $region39: #{generator_forward.1} parent=0 // pred_check_branch
    %35 = sbr.rel (0) target = $region41
  $region40: #{generator_forward.1} parent=0 // pred_region
    _
  $region41: #{generator_forward.1} parent=0 // pred_fallthru
    _
  // Predicated region
  $region42: #{generator_forward.1} parent=0 // pred_check
    _
  $region43: #{generator_forward.1} parent=0 // pred_check_branch
    %37 = sbr.rel (0) target = $region45
  $region44: #{generator_forward.1} parent=0 // pred_region
    _
  $region45: #{generator_forward.1} parent=0 // pred_fallthru
    _
  %v39 = vld [vmem:[%s0] sm:$0xf]
  %v40 = vld [vmem:[%s2] sm:$0x3f]
  %v41 = vld [vmem:[%s1] sm:$0xf]
  %v42 = vld [vmem:[%s3] sm:$0xff]
  %v43 = vld [vmem:[%s3 + $0x8] sm:$0xf]
  %v44 = vld [vmem:[%s3 + $0xc] sm:$0xff]
  %v45 = vld [vmem:[%s3 + $0x14] sm:$0xf]
  %v46 = vld [vmem:[%s3 + $0x18] sm:$0xff]
  %v47 = vld [vmem:[%s3 + $0x20] sm:$0xf]
  %v48 = vld [vmem:[%s3 + $0x24] sm:$0xff]
  %v49 = vld [vmem:[%s3 + $0x2c] sm:$0xf]
  %v50 = vld [vmem:[%s3 + $0x30] sm:$0xff]
  %v51 = vld [vmem:[%s3 + $0x38] sm:$0xf]
  %v52 = vld [vmem:[%s3 + $0x3c] sm:$0xff]
  %v53 = vld [vmem:[%s3 + $0x44] sm:$0xf]
  %v54 = vld [vmem:[%s3 + $0x48] sm:$0x11]
  %v55 = vld [vmem:[%s3 + $0x50] sm:$0x1]
  %v70 = vunpack.c.l.b16 %v42
  %v71 = vunpack.c.h.b16 %v42
  %v72 = vunpack.c.l.b16 %v43
  %v73 = vunpack.c.l.b16 %v44
  %v74 = vunpack.c.h.b16 %v44
  %v75 = vunpack.c.l.b16 %v45
  %v76 = vunpack.c.l.b16 %v46
  %v77 = vunpack.c.h.b16 %v46
  %v78 = vunpack.c.l.b16 %v47
  %v79 = vunpack.c.l.b16 %v48
  %v80 = vunpack.c.h.b16 %v48
  %v81 = vunpack.c.l.b16 %v49
  %v82 = vunpack.c.l.b16 %v50
  %v83 = vunpack.c.h.b16 %v50
  %v84 = vunpack.c.l.b16 %v51
  %v85 = vunpack.c.l.b16 %v52
  %v86 = vunpack.c.h.b16 %v52
  %v87 = vunpack.c.l.b16 %v53
  %v88 = vunpack.c.l.b16 %v54
  %v89 = vunpack.c.h.b16 %v54
  %v90 = vunpack.c.l.b16 %v55
  %v91 = vpack.c.b16 %v73, %v70
  %v92 = vpack.c.b16 %v74, %v71
  %v93 = vpack.c.b16 %v75, %v72
  %v94 = vpack.c.b16 %v79, %v76
  %v95 = vpack.c.b16 %v80, %v77
  %v96 = vpack.c.b16 %v81, %v78
  %v97 = vpack.c.b16 %v85, %v82
  %v98 = vpack.c.b16 %v86, %v83
  %v99 = vpack.c.b16 %v87, %v84
  %v100 = vpack.c.b16 %v88, %v88
  %v101 = vpack.c.b16 %v89, %v89
  %v102 = vpack.c.b16 %v90, %v90
  %vm112 = vcmask 408576
  %v114 = vsel %vm112, %v41, 0
  %vm116 = vcmask 1040384
  %v118 = vsel %vm116, %v100, 0
  %v121 = vsel %vm116, %v101, 0
  %v124 = vsel %vm116, %v102, 0
  %126 = vmatprep.subr.bf16.mxu0 %v92
  %127 = vmatpush1.bf16.msra.mxu0 %v91
  %128 = vmatprep.subr.bf16.mxu0 %v95
  %129 = vmatpush1.bf16.msra.mxu0 %v94
  %130 = vmatprep.subr.bf16.mxu0 %v98
  %131 = vmatpush1.bf16.msra.mxu0 %v97
  %132 = vmatprep.subr.bf16.mxu0 %v121
  %133 = vmatpush1.bf16.msra.mxu0 %v118
  %134 = vmatprep.subr.bf16.mxu0 0
  %135 = vmatpush1.bf16.msra.mxu0 0
  %136 = vmatprep.subr.bf16.mxu0 0
  %137 = vmatpush1.bf16.msra.mxu0 0
  %138 = vmatprep.subr.bf16.mxu0 0
  %139 = vmatpush1.bf16.msra.mxu0 0
  %140 = vmatprep.subr.bf16.mxu0 0
  %141 = vmatpush1.bf16.msra.mxu0 0
  %142 = vmatprep.subr.bf16.mxu0 0
  %143 = vmatpush1.bf16.msra.mxu0 0
  %144 = vmatprep.subr.bf16.mxu0 0
  %145 = vmatpush1.bf16.msra.mxu0 0
  %146 = vmatprep.subr.bf16.mxu0 0
  %147 = vmatpush1.bf16.msra.mxu0 0
  %148 = vmatprep.subr.bf16.mxu0 0
  %149 = vmatpush1.bf16.msra.mxu0 0
  %150 = vmatprep.subr.bf16.mxu0 0
  %151 = vmatpush1.bf16.msra.mxu0 0
  %152 = vmatprep.subr.bf16.mxu0 0
  %153 = vmatpush1.bf16.msra.mxu0 0
  %154 = vmatprep.subr.bf16.mxu0 0
  %155 = vmatpush1.bf16.msra.mxu0 0
  %156 = vmatprep.subr.bf16.mxu0 0
  %157 = vmatpush1.bf16.msra.mxu0 0
  %158 = vmatprep.mubr.bf16.mxu0 0
  %159 = vmatmul.mubr.bf16.gmra.mrb[0].mxu0 %v114
  %v160 = vpop.f32.mrb[0].mxu0
  %v161 = vadd.f32 0.0, %v160
  %v162 = vpop.f32.mrb[0].mxu0
  %v163 = vadd.f32 0.0, %v162
  %v164 = vpop.f32.mrb[0].mxu0
  %v165 = vpop.f32.mrb[0].mxu0
  %166 = vdwg.mxu0
  %167 = vmatprep.subr.bf16.mxu0 0
  %168 = vmatpush1.bf16.msra.mxu0 %v93
  %169 = vmatprep.subr.bf16.mxu0 0
  %170 = vmatpush1.bf16.msra.mxu0 %v96
  %171 = vmatprep.subr.bf16.mxu0 0
  %172 = vmatpush1.bf16.msra.mxu0 %v99
  %173 = vmatprep.subr.bf16.mxu0 0
  %174 = vmatpush1.bf16.msra.mxu0 %v124
  %175 = vmatprep.subr.bf16.mxu0 0
  %176 = vmatpush1.bf16.msra.mxu0 0
  %177 = vmatprep.subr.bf16.mxu0 0
  %178 = vmatpush1.bf16.msra.mxu0 0
  %179 = vmatprep.subr.bf16.mxu0 0
  %180 = vmatpush1.bf16.msra.mxu0 0
  %181 = vmatprep.subr.bf16.mxu0 0
  %182 = vmatpush1.bf16.msra.mxu0 0
  %183 = vmatprep.subr.bf16.mxu0 0
  %184 = vmatpush1.bf16.msra.mxu0 0
  %185 = vmatprep.subr.bf16.mxu0 0
  %186 = vmatpush1.bf16.msra.mxu0 0
  %187 = vmatprep.subr.bf16.mxu0 0
  %188 = vmatpush1.bf16.msra.mxu0 0
  %189 = vmatprep.subr.bf16.mxu0 0
  %190 = vmatpush1.bf16.msra.mxu0 0
  %191 = vmatprep.subr.bf16.mxu0 0
  %192 = vmatpush1.bf16.msra.mxu0 0
  %193 = vmatprep.subr.bf16.mxu0 0
  %194 = vmatpush1.bf16.msra.mxu0 0
  %195 = vmatprep.subr.bf16.mxu0 0
  %196 = vmatpush1.bf16.msra.mxu0 0
  %197 = vmatprep.subr.bf16.mxu0 0
  %198 = vmatpush1.bf16.msra.mxu0 0
  %199 = vmatprep.mubr.bf16.mxu0 0
  %200 = vmatmul.mubr.bf16.gmra.mrb[0].mxu0 %v114
  %v201 = vpop.f32.mrb[0].mxu0
  %v202 = vadd.f32 0.0, %v201
  %v203 = vpop.f32.mrb[0].mxu0
  %v204 = vpop.f32.mrb[0].mxu0
  %v205 = vpop.f32.mrb[0].mxu0
  %206 = vdwg.mxu0
  %v208 = vcombine.high %v40, %v40
  %v210 = vunpack.c.l.s4 1983009808
  %v211 = vunpack.c.0.s8 %v210
  %v212 = vlaneseq
  %v213 = vshrl.u32 %v212, 7
  %v214 = vsub.s32 %v211, %v213
  %v215 = vrot.slane %v40, %v214
  %v217 = vunpack.c.l.s4 1983009808
  %v218 = vunpack.c.0.s8 %v217
  %v219 = vlaneseq
  %v220 = vshrl.u32 %v219, 7
  %v221 = vsub.s32 %v218, %v220
  %v222 = vrot.slane %v208, %v221
  %v223 = vcombine.high %v215, %v215
  %vm224 = vcmask 31744
  %v226 = vsel %vm224, %v39, 0
  %vm228 = vcmask 1041408
  %v230 = vsel %vm228, %v215, 0
  %v233 = vsel %vm228, %v223, 0
  %v236 = vsel %vm228, %v222, 0
  %238 = vmatprep.subr.bf16.mxu0 %v233
  %239 = vmatpush1.bf16.msra.mxu0 %v230
  %240 = vmatprep.subr.bf16.mxu0 0
  %241 = vmatpush1.bf16.msra.mxu0 0
  %242 = vmatprep.subr.bf16.mxu0 0
  %243 = vmatpush1.bf16.msra.mxu0 0
  %244 = vmatprep.subr.bf16.mxu0 0
  %245 = vmatpush1.bf16.msra.mxu0 0
  %246 = vmatprep.subr.bf16.mxu0 0
  %247 = vmatpush1.bf16.msra.mxu0 0
  %248 = vmatprep.subr.bf16.mxu0 0
  %249 = vmatpush1.bf16.msra.mxu0 0
  %250 = vmatprep.subr.bf16.mxu0 0
  %251 = vmatpush1.bf16.msra.mxu0 0
  %252 = vmatprep.subr.bf16.mxu0 0
  %253 = vmatpush1.bf16.msra.mxu0 0
  %254 = vmatprep.subr.bf16.mxu0 0
  %255 = vmatpush1.bf16.msra.mxu0 0
  %256 = vmatprep.subr.bf16.mxu0 0
  %257 = vmatpush1.bf16.msra.mxu0 0
  %258 = vmatprep.subr.bf16.mxu0 0
  %259 = vmatpush1.bf16.msra.mxu0 0
  %260 = vmatprep.subr.bf16.mxu0 0
  %261 = vmatpush1.bf16.msra.mxu0 0
  %262 = vmatprep.subr.bf16.mxu0 0
  %263 = vmatpush1.bf16.msra.mxu0 0
  %264 = vmatprep.subr.bf16.mxu0 0
  %265 = vmatpush1.bf16.msra.mxu0 0
  %266 = vmatprep.subr.bf16.mxu0 0
  %267 = vmatpush1.bf16.msra.mxu0 0
  %268 = vmatprep.subr.bf16.mxu0 0
  %269 = vmatpush1.bf16.msra.mxu0 0
  %270 = vmatprep.mubr.bf16.mxu0 0
  %271 = vmatmul.mubr.bf16.gmra.mrb[0].mxu0 %v226
  %v272 = vpop.f32.mrb[0].mxu0
  %v273 = vadd.f32 %v161, %v272
  %v274 = vpop.f32.mrb[0].mxu0
  %v275 = vadd.f32 %v163, %v274
  %v276 = vpop.f32.mrb[0].mxu0
  %v277 = vpop.f32.mrb[0].mxu0
  %278 = vdwg.mxu0
  %279 = vmatprep.subr.bf16.mxu0 0
  %280 = vmatpush1.bf16.msra.mxu0 %v236
  %281 = vmatprep.subr.bf16.mxu0 0
  %282 = vmatpush1.bf16.msra.mxu0 0
  %283 = vmatprep.subr.bf16.mxu0 0
  %284 = vmatpush1.bf16.msra.mxu0 0
  %285 = vmatprep.subr.bf16.mxu0 0
  %286 = vmatpush1.bf16.msra.mxu0 0
  %287 = vmatprep.subr.bf16.mxu0 0
  %288 = vmatpush1.bf16.msra.mxu0 0
  %289 = vmatprep.subr.bf16.mxu0 0
  %290 = vmatpush1.bf16.msra.mxu0 0
  %291 = vmatprep.subr.bf16.mxu0 0
  %292 = vmatpush1.bf16.msra.mxu0 0
  %293 = vmatprep.subr.bf16.mxu0 0
  %294 = vmatpush1.bf16.msra.mxu0 0
  %295 = vmatprep.subr.bf16.mxu0 0
  %296 = vmatpush1.bf16.msra.mxu0 0
  %297 = vmatprep.subr.bf16.mxu0 0
  %298 = vmatpush1.bf16.msra.mxu0 0
  %299 = vmatprep.subr.bf16.mxu0 0
  %300 = vmatpush1.bf16.msra.mxu0 0
  %301 = vmatprep.subr.bf16.mxu0 0
  %302 = vmatpush1.bf16.msra.mxu0 0
  %303 = vmatprep.subr.bf16.mxu0 0
  %304 = vmatpush1.bf16.msra.mxu0 0
  %305 = vmatprep.subr.bf16.mxu0 0
  %306 = vmatpush1.bf16.msra.mxu0 0
  %307 = vmatprep.subr.bf16.mxu0 0
  %308 = vmatpush1.bf16.msra.mxu0 0
  %309 = vmatprep.subr.bf16.mxu0 0
  %310 = vmatpush1.bf16.msra.mxu0 0
  %311 = vmatprep.mubr.bf16.mxu0 0
  %312 = vmatmul.mubr.bf16.gmra.mrb[0].mxu0 %v226
  %v313 = vpop.f32.mrb[0].mxu0
  %v314 = vadd.f32 %v202, %v313
  %v315 = vpop.f32.mrb[0].mxu0
  %v316 = vpop.f32.mrb[0].mxu0
  %v317 = vpop.f32.mrb[0].mxu0
  %318 = vdwg.mxu0
  %v319 = vld [vmem:[%s4] sm:$0x7]
  %v321 = vlaneseq
  %v322 = vshrl.u32 %v321, 7
  %v323 = vsub.s32 0, %v322
  %v324 = vrot.slane %v319, %v323
  %v325 = vlaneseq
  %v326 = vshrl.u32 %v325, 7
  %v327 = vsub.s32 1, %v326
  %v328 = vrot.slane %v319, %v327
  %v329 = vlaneseq
  %v330 = vshrl.u32 %v329, 7
  %v331 = vsub.s32 2, %v330
  %v332 = vrot.slane %v319, %v331
  %v336 = vadd.f32 %v273, %v324
  %v337 = vadd.f32 %v275, %v328
  %v338 = vadd.f32 %v314, %v332
  %vm339 = vcmp.ge.f32.partialorder %v336, 0.0
  %vm340 = vcmp.ge.f32.partialorder %v337, 0.0
  %vm341 = vcmp.ge.f32.partialorder %v338, 0.0
  %v342 = vmul.f32 %v336, 0.2
  %v343 = vmul.f32 %v337, 0.2
  %v344 = vmul.f32 %v338, 0.2
  %v345 = vsel %vm339, %v336, %v342
  %v346 = vsel %vm340, %v337, %v343
  %v347 = vsel %vm341, %v338, %v344
  %v348 = vpack.c.bf16 %v345, %v345
  %v349 = vpack.c.bf16 %v346, %v346
  %v350 = vpack.c.bf16 %v347, %v347
  %v351 = vld [vmem:[%s5] sm:$0xff]
  %v352 = vld [vmem:[%s5 + $0x8] sm:$0xff]
  %v353 = vld [vmem:[%s5 + $0x10] sm:$0xff]
  %v354 = vld [vmem:[%s5 + $0x18] sm:$0xff]
  %v355 = vld [vmem:[%s5 + $0x20] sm:$0xff]
  %v356 = vld [vmem:[%s5 + $0x28] sm:$0xff]
  %v357 = vld [vmem:[%s5 + $0x30] sm:$0xff]
  %v358 = vld [vmem:[%s5 + $0x38] sm:$0xff]
  %v359 = vld [vmem:[%s5 + $0x40] sm:$0xff]
  %v360 = vld [vmem:[%s5 + $0x48] sm:$0xff]
  %v361 = vld [vmem:[%s5 + $0x50] sm:$0xff]
  %v362 = vld [vmem:[%s5 + $0x58] sm:$0xff]
  %v363 = vld [vmem:[%s5 + $0x60] sm:$0xff]
  %v364 = vld [vmem:[%s5 + $0x68] sm:$0xff]
  %v365 = vld [vmem:[%s5 + $0x70] sm:$0xff]
  %v366 = vld [vmem:[%s5 + $0x78] sm:$0xff]
  %v367 = vld [vmem:[%s5 + $0x80] sm:$0xff]
  %v368 = vld [vmem:[%s5 + $0x88] sm:$0xff]
  %v369 = vld [vmem:[%s5 + $0x90] sm:$0xff]
  %v370 = vld [vmem:[%s5 + $0x98] sm:$0xff]
  %v371 = vld [vmem:[%s5 + $0xa0] sm:$0xff]
  %v372 = vld [vmem:[%s5 + $0xa8] sm:$0xff]
  %v373 = vld [vmem:[%s5 + $0xb0] sm:$0xff]
  %v374 = vld [vmem:[%s5 + $0xb8] sm:$0xff]
  %v375 = vld [vmem:[%s5 + $0xc0] sm:$0xff]
  %v376 = vld [vmem:[%s5 + $0xc8] sm:$0xff]
  %v377 = vld [vmem:[%s5 + $0xd0] sm:$0xff]
  %v378 = vld [vmem:[%s5 + $0xd8] sm:$0xff]
  %v379 = vld [vmem:[%s5 + $0xe0] sm:$0xff]
  %v380 = vld [vmem:[%s5 + $0xe8] sm:$0xff]
  %v381 = vld [vmem:[%s5 + $0xf0] sm:$0xff]
  %v382 = vld [vmem:[%s5 + $0xf8] sm:$0xff]
  %v383 = vld [vmem:[%s5 + $0x100] sm:$0xff]
  %v384 = vld [vmem:[%s5 + $0x108] sm:$0xff]
  %v385 = vld [vmem:[%s5 + $0x110] sm:$0xff]
  %v386 = vld [vmem:[%s5 + $0x118] sm:$0xff]
  %v387 = vld [vmem:[%s6] sm:$0x3]
  %v389 = vlaneseq
  %v390 = vshrl.u32 %v389, 7
  %v391 = vsub.s32 0, %v390
  %v392 = vrot.slane %v387, %v391
  %v393 = vlaneseq
  %v394 = vshrl.u32 %v393, 7
  %v395 = vsub.s32 1, %v394
  %v396 = vrot.slane %v387, %v395
  %v435 = vunpack.c.l.b16 %v351
  %v436 = vunpack.c.h.b16 %v351
  %v437 = vunpack.c.l.b16 %v352
  %v438 = vunpack.c.h.b16 %v352
  %v439 = vunpack.c.l.b16 %v353
  %v440 = vunpack.c.h.b16 %v353
  %v441 = vunpack.c.l.b16 %v354
  %v442 = vunpack.c.h.b16 %v354
  %v443 = vunpack.c.l.b16 %v355
  %v444 = vunpack.c.h.b16 %v355
  %v445 = vunpack.c.l.b16 %v356
  %v446 = vunpack.c.h.b16 %v356
  %v447 = vunpack.c.l.b16 %v357
  %v448 = vunpack.c.h.b16 %v357
  %v449 = vunpack.c.l.b16 %v358
  %v450 = vunpack.c.h.b16 %v358
  %v451 = vunpack.c.l.b16 %v359
  %v452 = vunpack.c.h.b16 %v359
  %v453 = vunpack.c.l.b16 %v360
  %v454 = vunpack.c.h.b16 %v360
  %v455 = vunpack.c.l.b16 %v361
  %v456 = vunpack.c.h.b16 %v361
  %v457 = vunpack.c.l.b16 %v362
  %v458 = vunpack.c.h.b16 %v362
  %v459 = vunpack.c.l.b16 %v363
  %v460 = vunpack.c.h.b16 %v363
  %v461 = vunpack.c.l.b16 %v364
  %v462 = vunpack.c.h.b16 %v364
  %v463 = vunpack.c.l.b16 %v365
  %v464 = vunpack.c.h.b16 %v365
  %v465 = vunpack.c.l.b16 %v366
  %v466 = vunpack.c.h.b16 %v366
  %v467 = vunpack.c.l.b16 %v367
  %v468 = vunpack.c.h.b16 %v367
  %v469 = vunpack.c.l.b16 %v368
  %v470 = vunpack.c.h.b16 %v368
  %v471 = vunpack.c.l.b16 %v369
  %v472 = vunpack.c.h.b16 %v369
  %v473 = vunpack.c.l.b16 %v370
  %v474 = vunpack.c.h.b16 %v370
  %v475 = vunpack.c.l.b16 %v371
  %v476 = vunpack.c.h.b16 %v371
  %v477 = vunpack.c.l.b16 %v372
  %v478 = vunpack.c.h.b16 %v372
  %v479 = vunpack.c.l.b16 %v373
  %v480 = vunpack.c.h.b16 %v373
  %v481 = vunpack.c.l.b16 %v374
  %v482 = vunpack.c.h.b16 %v374
  %v483 = vunpack.c.l.b16 %v375
  %v484 = vunpack.c.h.b16 %v375
  %v485 = vunpack.c.l.b16 %v376
  %v486 = vunpack.c.h.b16 %v376
  %v487 = vunpack.c.l.b16 %v377
  %v488 = vunpack.c.h.b16 %v377
  %v489 = vunpack.c.l.b16 %v378
  %v490 = vunpack.c.h.b16 %v378
  %v491 = vunpack.c.l.b16 %v379
  %v492 = vunpack.c.h.b16 %v379
  %v493 = vunpack.c.l.b16 %v380
  %v494 = vunpack.c.h.b16 %v380
  %v495 = vunpack.c.l.b16 %v381
  %v496 = vunpack.c.h.b16 %v381
  %v497 = vunpack.c.l.b16 %v382
  %v498 = vunpack.c.h.b16 %v382
  %v499 = vunpack.c.l.b16 %v383
  %v500 = vunpack.c.h.b16 %v383
  %v501 = vunpack.c.l.b16 %v384
  %v502 = vunpack.c.h.b16 %v384
  %v503 = vunpack.c.l.b16 %v385
  %v504 = vunpack.c.h.b16 %v385
  %v505 = vunpack.c.l.b16 %v386
  %v506 = vunpack.c.h.b16 %v386
  %v507 = vpack.c.b16 %v437, %v435
  %v508 = vpack.c.b16 %v438, %v436
  %v509 = vpack.c.b16 %v441, %v439
  %v510 = vpack.c.b16 %v442, %v440
  %v511 = vpack.c.b16 %v445, %v443
  %v512 = vpack.c.b16 %v446, %v444
  %v513 = vpack.c.b16 %v449, %v447
  %v514 = vpack.c.b16 %v450, %v448
  %v515 = vpack.c.b16 %v453, %v451
  %v516 = vpack.c.b16 %v454, %v452
  %v517 = vpack.c.b16 %v457, %v455
  %v518 = vpack.c.b16 %v458, %v456
  %v519 = vpack.c.b16 %v461, %v459
  %v520 = vpack.c.b16 %v462, %v460
  %v521 = vpack.c.b16 %v465, %v463
  %v522 = vpack.c.b16 %v466, %v464
  %v523 = vpack.c.b16 %v469, %v467
  %v524 = vpack.c.b16 %v470, %v468
  %v525 = vpack.c.b16 %v473, %v471
  %v526 = vpack.c.b16 %v474, %v472
  %v527 = vpack.c.b16 %v477, %v475
  %v528 = vpack.c.b16 %v478, %v476
  %v529 = vpack.c.b16 %v481, %v479
  %v530 = vpack.c.b16 %v482, %v480
  %v531 = vpack.c.b16 %v485, %v483
  %v532 = vpack.c.b16 %v486, %v484
  %v533 = vpack.c.b16 %v489, %v487
  %v534 = vpack.c.b16 %v490, %v488
  %v535 = vpack.c.b16 %v493, %v491
  %v536 = vpack.c.b16 %v494, %v492
  %v537 = vpack.c.b16 %v497, %v495
  %v538 = vpack.c.b16 %v498, %v496
  %v539 = vpack.c.b16 %v501, %v499
  %v540 = vpack.c.b16 %v502, %v500
  %v541 = vpack.c.b16 %v505, %v503
  %v542 = vpack.c.b16 %v506, %v504
  %vm579 = vcmask 261120
  %v581 = vsel %vm579, %v350, 0
  %583 = vmatprep.subr.bf16.mxu0 %v508
  %584 = vmatpush1.bf16.msra.mxu0 %v507
  %585 = vmatprep.subr.bf16.mxu0 %v510
  %586 = vmatpush1.bf16.msra.mxu0 %v509
  %587 = vmatprep.subr.bf16.mxu0 %v512
  %588 = vmatpush1.bf16.msra.mxu0 %v511
  %589 = vmatprep.subr.bf16.mxu0 %v514
  %590 = vmatpush1.bf16.msra.mxu0 %v513
  %591 = vmatprep.subr.bf16.mxu0 %v516
  %592 = vmatpush1.bf16.msra.mxu0 %v515
  %593 = vmatprep.subr.bf16.mxu0 %v518
  %594 = vmatpush1.bf16.msra.mxu0 %v517
  %595 = vmatprep.subr.bf16.mxu0 %v520
  %596 = vmatpush1.bf16.msra.mxu0 %v519
  %597 = vmatprep.subr.bf16.mxu0 %v522
  %598 = vmatpush1.bf16.msra.mxu0 %v521
  %599 = vmatprep.subr.bf16.mxu0 %v524
  %600 = vmatpush1.bf16.msra.mxu0 %v523
  %601 = vmatprep.subr.bf16.mxu0 %v526
  %602 = vmatpush1.bf16.msra.mxu0 %v525
  %603 = vmatprep.subr.bf16.mxu0 %v528
  %604 = vmatpush1.bf16.msra.mxu0 %v527
  %605 = vmatprep.subr.bf16.mxu0 %v530
  %606 = vmatpush1.bf16.msra.mxu0 %v529
  %607 = vmatprep.subr.bf16.mxu0 %v532
  %608 = vmatpush1.bf16.msra.mxu0 %v531
  %609 = vmatprep.subr.bf16.mxu0 %v534
  %610 = vmatpush1.bf16.msra.mxu0 %v533
  %611 = vmatprep.subr.bf16.mxu0 %v536
  %612 = vmatpush1.bf16.msra.mxu0 %v535
  %613 = vmatprep.subr.bf16.mxu0 %v538
  %614 = vmatpush1.bf16.msra.mxu0 %v537
  %615 = vmatprep.mubr.bf16.mxu0 %v349
  %616 = vmatmul.mubr.bf16.gmra.mrb[0].mxu0 %v348
  %v617 = vpop.f32.mrb[0].mxu0
  %v618 = vadd.f32 %v392, %v617
  %v619 = vpop.f32.mrb[0].mxu0
  %v620 = vadd.f32 %v396, %v619
  %v621 = vpop.f32.mrb[0].mxu0
  %v622 = vpop.f32.mrb[0].mxu0
  %623 = vdwg.mxu0
  %624 = vmatprep.subr.bf16.mxu0 %v540
  %625 = vmatpush1.bf16.msra.mxu0 %v539
  %626 = vmatprep.subr.bf16.mxu0 %v542
  %627 = vmatpush1.bf16.msra.mxu0 %v541
  %628 = vmatprep.subr.bf16.mxu0 0
  %629 = vmatpush1.bf16.msra.mxu0 0
  %630 = vmatprep.subr.bf16.mxu0 0
  %631 = vmatpush1.bf16.msra.mxu0 0
  %632 = vmatprep.subr.bf16.mxu0 0
  %633 = vmatpush1.bf16.msra.mxu0 0
  %634 = vmatprep.subr.bf16.mxu0 0
  %635 = vmatpush1.bf16.msra.mxu0 0
  %636 = vmatprep.subr.bf16.mxu0 0
  %637 = vmatpush1.bf16.msra.mxu0 0
  %638 = vmatprep.subr.bf16.mxu0 0
  %639 = vmatpush1.bf16.msra.mxu0 0
  %640 = vmatprep.subr.bf16.mxu0 0
  %641 = vmatpush1.bf16.msra.mxu0 0
  %642 = vmatprep.subr.bf16.mxu0 0
  %643 = vmatpush1.bf16.msra.mxu0 0
  %644 = vmatprep.subr.bf16.mxu0 0
  %645 = vmatpush1.bf16.msra.mxu0 0
  %646 = vmatprep.subr.bf16.mxu0 0
  %647 = vmatpush1.bf16.msra.mxu0 0
  %648 = vmatprep.subr.bf16.mxu0 0
  %649 = vmatpush1.bf16.msra.mxu0 0
  %650 = vmatprep.subr.bf16.mxu0 0
  %651 = vmatpush1.bf16.msra.mxu0 0
  %652 = vmatprep.subr.bf16.mxu0 0
  %653 = vmatpush1.bf16.msra.mxu0 0
  %654 = vmatprep.subr.bf16.mxu0 0
  %655 = vmatpush1.bf16.msra.mxu0 0
  %656 = vmatprep.mubr.bf16.mxu0 0
  %657 = vmatmul.mubr.bf16.gmra.mrb[0].mxu0 %v581
  %v658 = vpop.f32.mrb[0].mxu0
  %v659 = vadd.f32 %v618, %v658
  %v660 = vpop.f32.mrb[0].mxu0
  %v661 = vadd.f32 %v620, %v660
  %v662 = vpop.f32.mrb[0].mxu0
  %v663 = vpop.f32.mrb[0].mxu0
  %664 = vdwg.mxu0
  %vm665 = vcmp.ge.f32.partialorder %v659, 0.0
  %vm666 = vcmp.ge.f32.partialorder %v661, 0.0
  %v667 = vmul.f32 %v659, 0.2
  %v668 = vmul.f32 %v661, 0.2
  %v669 = vsel %vm665, %v659, %v667
  %v670 = vsel %vm666, %v661, %v668
  %v671 = vpack.c.bf16 %v669, %v669
  %v672 = vpack.c.bf16 %v670, %v670
  %v673 = vld [vmem:[%s7] sm:$0xf]
  %v674 = vld [vmem:[%s7 + $0x4] sm:$0xf]
  %v675 = vld [vmem:[%s7 + $0x8] sm:$0xf]
  %v676 = vld [vmem:[%s7 + $0xc] sm:$0xf]
  %v677 = vld [vmem:[%s7 + $0x10] sm:$0xf]
  %v678 = vld [vmem:[%s7 + $0x14] sm:$0xf]
  %v679 = vld [vmem:[%s7 + $0x18] sm:$0xf]
  %v680 = vld [vmem:[%s7 + $0x1c] sm:$0xf]
  %v681 = vld [vmem:[%s7 + $0x20] sm:$0xf]
  %v682 = vld [vmem:[%s7 + $0x24] sm:$0xf]
  %v683 = vld [vmem:[%s7 + $0x28] sm:$0xf]
  %v684 = vld [vmem:[%s7 + $0x2c] sm:$0xf]
  %v685 = vld [vmem:[%s7 + $0x30] sm:$0xf]
  %v686 = vld [vmem:[%s7 + $0x34] sm:$0xf]
  %v687 = vld [vmem:[%s7 + $0x38] sm:$0xf]
  %v688 = vld [vmem:[%s7 + $0x3c] sm:$0xf]
  %v689 = vld [vmem:[%s7 + $0x40] sm:$0xf]
  %v690 = vld [vmem:[%s7 + $0x44] sm:$0xf]
  %v691 = vld [vmem:[%s7 + $0x48] sm:$0xf]
  %v692 = vld [vmem:[%s7 + $0x4c] sm:$0xf]
  %v693 = vld [vmem:[%s7 + $0x50] sm:$0xf]
  %v694 = vld [vmem:[%s7 + $0x54] sm:$0xf]
  %v695 = vld [vmem:[%s7 + $0x58] sm:$0xf]
  %v696 = vld [vmem:[%s7 + $0x5c] sm:$0xf]
  %v697 = vld [vmem:[%s7 + $0x60] sm:$0xf]
  %v698 = vld [vmem:[%s7 + $0x64] sm:$0xf]
  %v699 = vld [vmem:[%s7 + $0x68] sm:$0xf]
  %v700 = vld [vmem:[%s7 + $0x6c] sm:$0xf]
  %v701 = vld [vmem:[%s7 + $0x70] sm:$0xf]
  %v702 = vld [vmem:[%s7 + $0x74] sm:$0xf]
  %v703 = vld [vmem:[%s7 + $0x78] sm:$0xf]
  %v704 = vld [vmem:[%s7 + $0x7c] sm:$0xf]
  %v705 = vld [vmem:[%s8] sm:$0x1]
  %v707 = vlaneseq
  %v708 = vshrl.u32 %v707, 7
  %v709 = vsub.s32 0, %v708
  %v710 = vrot.slane %v705, %v709
  %v744 = vunpack.c.l.b16 %v673
  %v745 = vunpack.c.l.b16 %v674
  %v746 = vunpack.c.l.b16 %v675
  %v747 = vunpack.c.l.b16 %v676
  %v748 = vunpack.c.l.b16 %v677
  %v749 = vunpack.c.l.b16 %v678
  %v750 = vunpack.c.l.b16 %v679
  %v751 = vunpack.c.l.b16 %v680
  %v752 = vunpack.c.l.b16 %v681
  %v753 = vunpack.c.l.b16 %v682
  %v754 = vunpack.c.l.b16 %v683
  %v755 = vunpack.c.l.b16 %v684
  %v756 = vunpack.c.l.b16 %v685
  %v757 = vunpack.c.l.b16 %v686
  %v758 = vunpack.c.l.b16 %v687
  %v759 = vunpack.c.l.b16 %v688
  %v760 = vunpack.c.l.b16 %v689
  %v761 = vunpack.c.l.b16 %v690
  %v762 = vunpack.c.l.b16 %v691
  %v763 = vunpack.c.l.b16 %v692
  %v764 = vunpack.c.l.b16 %v693
  %v765 = vunpack.c.l.b16 %v694
  %v766 = vunpack.c.l.b16 %v695
  %v767 = vunpack.c.l.b16 %v696
  %v768 = vunpack.c.l.b16 %v697
  %v769 = vunpack.c.l.b16 %v698
  %v770 = vunpack.c.l.b16 %v699
  %v771 = vunpack.c.l.b16 %v700
  %v772 = vunpack.c.l.b16 %v701
  %v773 = vunpack.c.l.b16 %v702
  %v774 = vunpack.c.l.b16 %v703
  %v775 = vunpack.c.l.b16 %v704
  %v776 = vpack.c.b16 %v745, %v744
  %v777 = vpack.c.b16 %v747, %v746
  %v778 = vpack.c.b16 %v749, %v748
  %v779 = vpack.c.b16 %v751, %v750
  %v780 = vpack.c.b16 %v753, %v752
  %v781 = vpack.c.b16 %v755, %v754
  %v782 = vpack.c.b16 %v757, %v756
  %v783 = vpack.c.b16 %v759, %v758
  %v784 = vpack.c.b16 %v761, %v760
  %v785 = vpack.c.b16 %v763, %v762
  %v786 = vpack.c.b16 %v765, %v764
  %v787 = vpack.c.b16 %v767, %v766
  %v788 = vpack.c.b16 %v769, %v768
  %v789 = vpack.c.b16 %v771, %v770
  %v790 = vpack.c.b16 %v773, %v772
  %v791 = vpack.c.b16 %v775, %v774
  %808 = vmatprep.subr.bf16.mxu0 0
  %809 = vmatpush1.bf16.msra.mxu0 %v776
  %810 = vmatprep.subr.bf16.mxu0 0
  %811 = vmatpush1.bf16.msra.mxu0 %v777
  %812 = vmatprep.subr.bf16.mxu0 0
  %813 = vmatpush1.bf16.msra.mxu0 %v778
  %814 = vmatprep.subr.bf16.mxu0 0
  %815 = vmatpush1.bf16.msra.mxu0 %v779
  %816 = vmatprep.subr.bf16.mxu0 0
  %817 = vmatpush1.bf16.msra.mxu0 %v780
  %818 = vmatprep.subr.bf16.mxu0 0
  %819 = vmatpush1.bf16.msra.mxu0 %v781
  %820 = vmatprep.subr.bf16.mxu0 0
  %821 = vmatpush1.bf16.msra.mxu0 %v782
  %822 = vmatprep.subr.bf16.mxu0 0
  %823 = vmatpush1.bf16.msra.mxu0 %v783
  %824 = vmatprep.subr.bf16.mxu0 0
  %825 = vmatpush1.bf16.msra.mxu0 %v784
  %826 = vmatprep.subr.bf16.mxu0 0
  %827 = vmatpush1.bf16.msra.mxu0 %v785
  %828 = vmatprep.subr.bf16.mxu0 0
  %829 = vmatpush1.bf16.msra.mxu0 %v786
  %830 = vmatprep.subr.bf16.mxu0 0
  %831 = vmatpush1.bf16.msra.mxu0 %v787
  %832 = vmatprep.subr.bf16.mxu0 0
  %833 = vmatpush1.bf16.msra.mxu0 %v788
  %834 = vmatprep.subr.bf16.mxu0 0
  %835 = vmatpush1.bf16.msra.mxu0 %v789
  %836 = vmatprep.subr.bf16.mxu0 0
  %837 = vmatpush1.bf16.msra.mxu0 %v790
  %838 = vmatprep.subr.bf16.mxu0 0
  %839 = vmatpush1.bf16.msra.mxu0 %v791
  %840 = vmatprep.mubr.bf16.mxu0 %v672
  %841 = vmatmul.mubr.bf16.gmra.mrb[0].mxu0 %v671
  %v842 = vpop.f32.mrb[0].mxu0
  %v843 = vadd.f32 %v710, %v842
  %v844 = vpop.f32.mrb[0].mxu0
  %v845 = vpop.f32.mrb[0].mxu0
  %v846 = vpop.f32.mrb[0].mxu0
  %847 = vdwg.mxu0
  %vm848 = vcmp.ge.f32.partialorder %v843, 0.0
  %v849 = vmul.f32 %v843, 0.2
  %v850 = vsel %vm848, %v843, %v849
  %v851 = vpack.c.bf16 %v850, %v850
  %v852 = vld [vmem:[%s9] sm:$0xf]
  %v853 = vld [vmem:[%s9 + $0x4] sm:$0xf]
  %v854 = vld [vmem:[%s9 + $0x8] sm:$0xf]
  %v855 = vld [vmem:[%s9 + $0xc] sm:$0xf]
  %v856 = vld [vmem:[%s9 + $0x10] sm:$0xf]
  %v857 = vld [vmem:[%s9 + $0x14] sm:$0xf]
  %v858 = vld [vmem:[%s9 + $0x18] sm:$0xf]
  %v859 = vld [vmem:[%s9 + $0x1c] sm:$0xf]
  %v860 = vld [vmem:[%s10] sm:$0x1]
  %v862 = vlaneseq
  %v863 = vshrl.u32 %v862, 7
  %v864 = vsub.s32 0, %v863
  %v865 = vrot.slane %v860, %v864
  %v875 = vunpack.c.l.b16 %v852
  %v876 = vunpack.c.l.b16 %v853
  %v877 = vunpack.c.l.b16 %v854
  %v878 = vunpack.c.l.b16 %v855
  %v879 = vunpack.c.l.b16 %v856
  %v880 = vunpack.c.l.b16 %v857
  %v881 = vunpack.c.l.b16 %v858
  %v882 = vunpack.c.l.b16 %v859
  %v883 = vpack.c.b16 %v876, %v875
  %v884 = vpack.c.b16 %v878, %v877
  %v885 = vpack.c.b16 %v880, %v879
  %v886 = vpack.c.b16 %v882, %v881
  %vm891 = vcmask 523264
  %v893 = vsel %vm891, %v851, 0
  %895 = vmatprep.subr.bf16.mxu0 0
  %896 = vmatpush1.bf16.msra.mxu0 %v883
  %897 = vmatprep.subr.bf16.mxu0 0
  %898 = vmatpush1.bf16.msra.mxu0 %v884
  %899 = vmatprep.subr.bf16.mxu0 0
  %900 = vmatpush1.bf16.msra.mxu0 %v885
  %901 = vmatprep.subr.bf16.mxu0 0
  %902 = vmatpush1.bf16.msra.mxu0 %v886
  %903 = vmatprep.subr.bf16.mxu0 0
  %904 = vmatpush1.bf16.msra.mxu0 0
  %905 = vmatprep.subr.bf16.mxu0 0
  %906 = vmatpush1.bf16.msra.mxu0 0
  %907 = vmatprep.subr.bf16.mxu0 0
  %908 = vmatpush1.bf16.msra.mxu0 0
  %909 = vmatprep.subr.bf16.mxu0 0
  %910 = vmatpush1.bf16.msra.mxu0 0
  %911 = vmatprep.subr.bf16.mxu0 0
  %912 = vmatpush1.bf16.msra.mxu0 0
  %913 = vmatprep.subr.bf16.mxu0 0
  %914 = vmatpush1.bf16.msra.mxu0 0
  %915 = vmatprep.subr.bf16.mxu0 0
  %916 = vmatpush1.bf16.msra.mxu0 0
  %917 = vmatprep.subr.bf16.mxu0 0
  %918 = vmatpush1.bf16.msra.mxu0 0
  %919 = vmatprep.subr.bf16.mxu0 0
  %920 = vmatpush1.bf16.msra.mxu0 0
  %921 = vmatprep.subr.bf16.mxu0 0
  %922 = vmatpush1.bf16.msra.mxu0 0
  %923 = vmatprep.subr.bf16.mxu0 0
  %924 = vmatpush1.bf16.msra.mxu0 0
  %925 = vmatprep.subr.bf16.mxu0 0
  %926 = vmatpush1.bf16.msra.mxu0 0
  %927 = vmatprep.mubr.bf16.mxu0 0
  %928 = vmatmul.mubr.bf16.gmra.mrb[0].mxu0 %v893
  %v929 = vpop.f32.mrb[0].mxu0
  %v930 = vadd.f32 %v865, %v929
  %v931 = vpop.f32.mrb[0].mxu0
  %v932 = vpop.f32.mrb[0].mxu0
  %v933 = vpop.f32.mrb[0].mxu0
  %934 = vdwg.mxu0
  %935 = vst.msk [vmem:[%s11] sm:$0xff] %vm224, %v930
  // Predicated region
  $region46: #{generator_forward.1} parent=0 // pred_check
    _
  $region47: #{generator_forward.1} parent=0 // pred_check_branch
    %937 = sbr.rel (0) target = $region49
  $region48: #{generator_forward.1} parent=0 // pred_region
    _
  $region49: #{generator_forward.1} parent=0 // pred_fallthru
    _
  // Predicated region
  $region50: #{generator_forward.1} parent=0 // pred_check
    _
  $region51: #{generator_forward.1} parent=0 // pred_check_branch
    %939 = sbr.rel (0) target = $region53
  $region52: #{generator_forward.1} parent=0 // pred_region
    _
  $region53: #{generator_forward.1} parent=0 // pred_fallthru
    _

</llo_original>
